<compile_context>
chip_gen: v6e
topology: v6e:2x2x1
jax: 0.10.0
libtpu: 0.0.40
codegen_flags: <defaults>
</compile_context>

<pallas_src>
import jax
import jax.numpy as jnp
from jax.experimental import pallas as pl
from jax.experimental.pallas import tpu as pltpu


def _fused_linear_add_kernel(x1_ref, wt_ref, add_ref, o_ref):
    # x1:  (B, IN)      activations
    # wt:  (IN, OUT)    weight already transposed in the wrapper
    # add: (B, OUT)     x2 + bias, folded in the wrapper
    v1 = jnp.dot(x1_ref[...], wt_ref[...], preferred_element_type=jnp.float32)
    o_ref[...] = (v1 + add_ref[...]).astype(o_ref.dtype)


@jax.jit
def linear_add(x1, x2, weight, bias):
    B, IN = x1.shape
    OUT = weight.shape[0]

    # Layout plumbing done once, outside the kernel (fuses into trivial XLA ops):
    wt = weight.T                 # (IN, OUT): canonical MXU orientation
    add = x2 + bias[None, :]      # (B, OUT): bias folded -> one fewer DMA stream

    return pl.pallas_call(
        _fused_linear_add_kernel,
        out_shape=jax.ShapeDtypeStruct((B, OUT), x1.dtype),
        # Tiny problem: each block is the full array (allowed when block == full
        # dims), no grid. Overhead here is call launch, not compute.
        in_specs=[
            pl.BlockSpec((B, IN), lambda: (0, 0),
                         memory_space=pltpu.MemorySpace.VMEM),
            pl.BlockSpec((IN, OUT), lambda: (0, 0),
                         memory_space=pltpu.MemorySpace.VMEM),
            pl.BlockSpec((B, OUT), lambda: (0, 0),
                         memory_space=pltpu.MemorySpace.VMEM),
        ],
        out_specs=pl.BlockSpec((B, OUT), lambda: (0, 0),
                               memory_space=pltpu.MemorySpace.VMEM),
    )(x1, wt, add)


if __name__ == "__main__":
    key = jax.random.PRNGKey(0)
    k1, k2, kw, kb = jax.random.split(key, 4)

    B, IN, OUT = 4, 8, 8
    x1 = jax.random.normal(k1, (B, IN), dtype=jnp.float32)
    x2 = jax.random.normal(k2, (B, OUT), dtype=jnp.float32)

    # Deterministic nn.Linear-style init: uniform in [-1/sqrt(in), 1/sqrt(in)]
    bound = 1.0 / (IN ** 0.5)
    weight = jax.random.uniform(kw, (OUT, IN), minval=-bound, maxval=bound,
                                dtype=jnp.float32)
    bias = jax.random.uniform(kb, (OUT,), minval=-bound, maxval=bound,
                              dtype=jnp.float32)

    out = linear_add(x1, x2, weight, bias)
    jax.block_until_ready(out)

    # Reference check in plain JAX
    ref = x1 @ weight.T + bias + x2
    assert jnp.allclose(out, ref, atol=1e-5, rtol=1e-5), "mismatch vs reference"

    print("KERNEL_OK")
</pallas_src>

<mosaic_0001>
module attributes {stable_mosaic.version = 11 : i64} {
  func.func @_fused_linear_add_kernel(%arg0: memref<4x8xf32, #tpu.memory_space<vmem>>, %arg1: memref<8x8xf32, #tpu.memory_space<vmem>>, %arg2: memref<4x8xf32, #tpu.memory_space<vmem>>, %arg3: memref<4x8xf32, #tpu.memory_space<vmem>>) attributes {dimension_semantics = [], scalar_prefetch = 0 : i64, scratch_operands = 0 : i64, tpu.core_type = #tpu.core_type<tc>} {
    %c0 = arith.constant 0 : index
    %c0_0 = arith.constant 0 : index
    %0 = vector.load %arg0[%c0, %c0_0] : memref<4x8xf32, #tpu.memory_space<vmem>>, vector<4x8xf32>
    %c0_1 = arith.constant 0 : index
    %c0_2 = arith.constant 0 : index
    %1 = vector.load %arg1[%c0_1, %c0_2] : memref<8x8xf32, #tpu.memory_space<vmem>>, vector<8x8xf32>
    %cst = arith.constant dense<0.000000e+00> : vector<4x8xf32>
    %2 = tpu.matmul %0, %1, %cst {dimension_numbers = #tpu.dot_dimension_numbers<[1], [0], [0], [1], [0, 0, 1, 1], [], []>} : vector<4x8xf32>, vector<8x8xf32>, vector<4x8xf32> -> vector<4x8xf32>
    %c0_3 = arith.constant 0 : index
    %c0_4 = arith.constant 0 : index
    %3 = vector.load %arg2[%c0_3, %c0_4] : memref<4x8xf32, #tpu.memory_space<vmem>>, vector<4x8xf32>
    %4 = arith.addf %2, %3 : vector<4x8xf32>
    %c0_5 = arith.constant 0 : index
    %c0_6 = arith.constant 0 : index
    %5 = vector.load %arg3[%c0_5, %c0_6] : memref<4x8xf32, #tpu.memory_space<vmem>>, vector<4x8xf32>
    tpu.vector_store %arg3[%c0_5, %c0_6], %4 {strides = array<i32>} : memref<4x8xf32, #tpu.memory_space<vmem>>, vector<4x8xf32>,
    return
  }
}

</mosaic_0001>

<llo_original>
// kernel: linear_add.1
$region0: #{linear_add.1}
  #allocation0 [shape = 'u32[]', space=smem, size = 0x4, offset = 0x4, fixed_abs, tag = 'smem constant byte address 0x4 - core index']
  #allocation1 [shape = 'u32[144,128]{1,0:T(1,128)}', space=vmem, size = 0x12000, scoped, tag = 'internal scratch']
  %s0 = inlined_call_operand.vmem [shape: f32[4,8], index: 0, kind: input, shape index: {}]
  %s1 = inlined_call_operand.vmem [shape: f32[8,8], index: 1, kind: input, shape index: {}]
  %s2 = inlined_call_operand.vmem [shape: f32[4,8], index: 2, kind: input, shape index: {}]
  %s3 = inlined_call_operand.hbm [shape: f32[4,8], index: 3, kind: output, shape index: {}]
  %s4 = sld [smem:[#allocation0]]
  $region22: #{linear_add.1} parent=0
    _
  %s6 = ssub.s32 1, %s4
  %s7 = scalar_select 0, %s6, %s4
  $region1: #{linear_add.1} parent=0
    #allocation2 [shape = 'u8[2048]{0}', space=vmem, size = 0x800, scoped, tag = 'output window, operand 0, single buffered']
    #allocation3 [shape = 's32[1]{0}', space=sflag, size = 0x4, scoped, tag = 'scoped memory for linear_add.1']
    %8 = vsyncpa [#allocation3], 0
    // Predicated region
    $region2: #{linear_add.1} parent=1 // pred_check
      _
    $region3: #{linear_add.1} parent=1 // pred_check_branch
      %10 = sbr.rel (0) target = $region5
    $region4: #{linear_add.1} parent=1 // pred_region
      _
    $region5: #{linear_add.1} parent=1 // pred_fallthru
      _
    // Predicated region
    $region6: #{linear_add.1} parent=1 // pred_check
      _
    $region7: #{linear_add.1} parent=1 // pred_check_branch
      %12 = sbr.rel (0) target = $region9
    $region8: #{linear_add.1} parent=1 // pred_region
      _
    $region9: #{linear_add.1} parent=1 // pred_fallthru
      _
    // Predicated region
    $region10: #{linear_add.1} parent=1 // pred_check
      _
    $region11: #{linear_add.1} parent=1 // pred_check_branch
      %14 = sbr.rel (0) target = $region13
    $region12: #{linear_add.1} parent=1 // pred_region
      _
    $region13: #{linear_add.1} parent=1 // pred_fallthru
      _
    %v15 = vld [vmem:[%s0] sm:$0xf]
    %v16 = vld [vmem:[%s1] sm:$0xff]
    %v17 = vld [vmem:[%s2] sm:$0xf]
    %vm18 = vcmask 64512
    %v20 = vsel %vm18, %v15, 0
    %22 = vmatprep.subr.mxu0 0.0
    %23 = vmatpush1.msra.mxu0 0.0
    %24 = vmatprep.subr.mxu0 0.0
    %25 = vmatpush1.msra.mxu0 0.0
    %26 = vmatprep.subr.mxu0 0.0
    %27 = vmatpush1.msra.mxu0 0.0
    %28 = vmatprep.subr.mxu0 0.0
    %29 = vmatpush1.msra.mxu0 0.0
    %30 = vmatprep.subr.mxu0 0.0
    %31 = vmatpush1.msra.mxu0 0.0
    %32 = vmatprep.subr.mxu0 0.0
    %33 = vmatpush1.msra.mxu0 0.0
    %34 = vmatprep.subr.mxu0 0.0
    %35 = vmatpush1.msra.mxu0 0.0
    %36 = vmatprep.subr.mxu0 0.0
    %37 = vmatpush1.msra.mxu0 0.0
    %38 = vmatprep.subr.mxu0 0.0
    %39 = vmatpush1.msra.mxu0 0.0
    %40 = vmatprep.subr.mxu0 0.0
    %41 = vmatpush1.msra.mxu0 0.0
    %42 = vmatprep.subr.mxu0 0.0
    %43 = vmatpush1.msra.mxu0 0.0
    %44 = vmatprep.subr.mxu0 0.0
    %45 = vmatpush1.msra.mxu0 0.0
    %46 = vmatprep.subr.mxu0 0.0
    %47 = vmatpush1.msra.mxu0 0.0
    %48 = vmatprep.subr.mxu0 0.0
    %49 = vmatpush1.msra.mxu0 0.0
    %50 = vmatprep.subr.mxu0 0.0
    %51 = vmatpush1.msra.mxu0 0.0
    %52 = vmatprep.subr.mxu0 0.0
    %53 = vmatpush1.msra.mxu0 %v16
    %54 = vmatprep.subr.mxu0 0.0
    %55 = vmatpush2.msra.mxu0 0.0
    %56 = vmatprep.subr.mxu0 0.0
    %57 = vmatpush2.msra.mxu0 0.0
    %58 = vmatprep.subr.mxu0 0.0
    %59 = vmatpush2.msra.mxu0 0.0
    %60 = vmatprep.subr.mxu0 0.0
    %61 = vmatpush2.msra.mxu0 0.0
    %62 = vmatprep.subr.mxu0 0.0
    %63 = vmatpush2.msra.mxu0 0.0
    %64 = vmatprep.subr.mxu0 0.0
    %65 = vmatpush2.msra.mxu0 0.0
    %66 = vmatprep.subr.mxu0 0.0
    %67 = vmatpush2.msra.mxu0 0.0
    %68 = vmatprep.subr.mxu0 0.0
    %69 = vmatpush2.msra.mxu0 0.0
    %70 = vmatprep.subr.mxu0 0.0
    %71 = vmatpush2.msra.mxu0 0.0
    %72 = vmatprep.subr.mxu0 0.0
    %73 = vmatpush2.msra.mxu0 0.0
    %74 = vmatprep.subr.mxu0 0.0
    %75 = vmatpush2.msra.mxu0 0.0
    %76 = vmatprep.subr.mxu0 0.0
    %77 = vmatpush2.msra.mxu0 0.0
    %78 = vmatprep.subr.mxu0 0.0
    %79 = vmatpush2.msra.mxu0 0.0
    %80 = vmatprep.subr.mxu0 0.0
    %81 = vmatpush2.msra.mxu0 0.0
    %82 = vmatprep.subr.mxu0 0.0
    %83 = vmatpush2.msra.mxu0 0.0
    %84 = vmatprep.subr.mxu0 0.0
    %85 = vmatpush2.msra.mxu0 0.0
    %86 = vmatprep.mubr.f32.mxu0 0.0
    %87 = vmatmul.mubr.f32.gmra.mxu0 %v20
    %v88 = vpop.f32.mrf.mxu0
    %v89 = vadd.f32 %v17, %v88
    %v90 = vpop.f32.mrf.mxu0
    %91 = vdwg.mxu0
    %vm92 = vcmask 60416
    %93 = vst.msk [vmem:[#allocation2] sm:$0xf] %vm92, %v89
    // Predicated region
    $region14: #{linear_add.1} parent=1 // pred_check
      _
    $region15: #{linear_add.1} parent=1 // pred_check_branch
      %95 = sbr.rel (0) target = $region17
    $region16: #{linear_add.1} parent=1 // pred_region
      %s97 = ssub.s32 64, 64
      %98 = vsyncadd [#allocation3], %s97
      %s100 = sshll.u32 [#allocation2], 4
      %s101 = int_to_ptr.vmem [resolvable:$true] %s100
      %103 = dma.vmem_to_hbm [thread:$0]  %s101, 64, %s3, [#allocation3]
    $region17: #{linear_add.1} parent=1 // pred_fallthru
      _
    // Predicated region
    $region18: #{linear_add.1} parent=1 // pred_check
      _
    $region19: #{linear_add.1} parent=1 // pred_check_branch
      %105 = sbr.rel (0) target = $region21
    $region20: #{linear_add.1} parent=1 // pred_region
      %106 = dma.done [#allocation3], 64
    $region21: #{linear_add.1} parent=1 // pred_fallthru
      _
    %107 = vsyncpa [#allocation3], 1

</llo_original>
